<compile_context>
chip_gen: v7x
topology: tpu7x:2x2x1
jax: 0.10.0
libtpu: 0.0.40
codegen_flags: <defaults>
</compile_context>

<pallas_src>
import jax
import jax.numpy as jnp
from jax.experimental import pallas as pl
from jax.experimental.pallas import tpu as pltpu

IN_CHANNELS = 128   # small, divisible, stands in for the default 256
N_ROWS = 64         # number of feature vectors per domain


def _disc_kernel(fs_ref, ft_ref, w_ref, b_ref, out_ref):
    """Whole problem resident in VMEM: folded affine map + per-domain BCE means."""
    # TODO(synk): GradientReversal only affects the backward pass; forward is identity.

    # Cast activations to bf16 in-kernel (avoids a wrapper-side HBM copy);
    # MXU accumulates in f32, all elementwise math stays f32.
    fs = fs_ref[...].astype(jnp.bfloat16)                         # (Ns, C)
    ft = ft_ref[...].astype(jnp.bfloat16)                         # (Nt, C)
    w = w_ref[...]                                                # (C, 2) bf16
    b = b_ref[...]                                                # (1, 2) f32

    xs = jnp.dot(fs, w, preferred_element_type=jnp.float32) + b   # (Ns, 2) f32
    xt = jnp.dot(ft, w, preferred_element_type=jnp.float32) + b   # (Nt, 2) f32

    # BCE-with-logits with constant labels:
    #   label 1 (source): bce = softplus(-x);  label 0 (target): bce = softplus(x)
    # stable softplus(z) = max(z, 0) + log1p(exp(-|z|)), and |z| == |x|.
    loss_s = jnp.maximum(-xs, 0.0) + jnp.log1p(jnp.exp(-jnp.abs(xs)))
    loss_t = jnp.maximum(xt, 0.0) + jnp.log1p(jnp.exp(-jnp.abs(xt)))

    # Per-domain means (matches PyTorch exactly, valid even if Ns != Nt).
    out_ref[0, 0] = 0.5 * (jnp.mean(loss_s) + jnp.mean(loss_t))


def fold_params(params):
    """Fold ln1/ln2/ln3 (no activations between them) into one affine map, in f32.

    Call once per parameter update and reuse across steps; only the folded
    weight is cast to bf16 (a single rounding instead of three).
    """
    w1, b1, w2, b2, w3, b3 = params
    w_fold = (w1 @ w2) @ w3                          # (C, 2)  f32
    b_fold = (b1 @ w2 + b2) @ w3 + b3                # (1, 2)  f32
    return w_fold.astype(jnp.bfloat16), b_fold


def fcos_discriminator_loss(features_s, features_t, folded_params):
    w_fold, b_fold = folded_params
    ns, c = features_s.shape
    nt, _ = features_t.shape

    flops = 2 * (ns + nt) * c * 2
    transcendentals = 2 * (ns + nt) * 2              # exp + log1p per logit
    bytes_accessed = ((features_s.size + features_t.size + b_fold.size) * 4
                      + w_fold.size * 2 + 4)

    vmem = pl.BlockSpec(memory_space=pltpu.MemorySpace.VMEM)
    out = pl.pallas_call(
        _disc_kernel,
        out_shape=jax.ShapeDtypeStruct((1, 1), jnp.float32),
        in_specs=[vmem, vmem, vmem, vmem],
        out_specs=pl.BlockSpec(memory_space=pltpu.MemorySpace.SMEM),
        cost_estimate=pl.CostEstimate(flops=flops,
                                      transcendentals=transcendentals,
                                      bytes_accessed=bytes_accessed),
    )(features_s, features_t, w_fold, b_fold)
    return out[0, 0]


def init_params(key, in_channels):
    """Deterministic synthetic init (uniform +-1/sqrt(fan_in), like nn.Linear)."""
    c1, c2, c3 = in_channels, in_channels // 2, in_channels // 4
    ks = jax.random.split(key, 6)

    def lin(kw, kb, fan_in, fan_out):
        bound = 1.0 / jnp.sqrt(fan_in)
        w = jax.random.uniform(kw, (fan_in, fan_out), jnp.float32, -bound, bound)
        b = jax.random.uniform(kb, (1, fan_out), jnp.float32, -bound, bound)
        return w, b

    w1, b1 = lin(ks[0], ks[1], c1, c2)
    w2, b2 = lin(ks[2], ks[3], c2, c3)
    w3, b3 = lin(ks[4], ks[5], c3, 2)
    return (w1, b1, w2, b2, w3, b3)


def reference_loss(features_s, features_t, params):
    """Pure-JAX f32 reference of the PyTorch forward (un-folded 3-layer MLP)."""
    w1, b1, w2, b2, w3, b3 = params

    def logits(f):
        return ((f @ w1 + b1) @ w2 + b2) @ w3 + b3

    def bce(x, y):
        return jnp.maximum(x, 0.0) - x * y + jnp.log1p(jnp.exp(-jnp.abs(x)))

    return (jnp.mean(bce(logits(features_s), 1.0)) +
            jnp.mean(bce(logits(features_t), 0.0))) * 0.5


if __name__ == "__main__":
    key = jax.random.PRNGKey(0)
    k_params, k_s, k_t = jax.random.split(key, 3)

    params = init_params(k_params, IN_CHANNELS)
    features_s = jax.random.normal(k_s, (N_ROWS, IN_CHANNELS), jnp.float32)
    features_t = jax.random.normal(k_t, (N_ROWS, IN_CHANNELS), jnp.float32)

    # Fold once (hoisted out of the per-step path), then run the kernel.
    folded = fold_params(params)
    loss_fn = jax.jit(fcos_discriminator_loss)
    loss = jax.block_until_ready(loss_fn(features_s, features_t, folded))

    ref = reference_loss(features_s, features_t, params)
    # Single bf16 rounding of the folded weight -> tighter tolerance than before.
    assert jnp.allclose(loss, ref, rtol=2e-2, atol=5e-3), (loss, ref)

    print("KERNEL_OK")
</pallas_src>

<mosaic_0001>
module attributes {stable_mosaic.version = 11 : i64} {
  func.func @_disc_kernel(%arg0: memref<64x128xf32, #tpu.memory_space<vmem>>, %arg1: memref<64x128xf32, #tpu.memory_space<vmem>>, %arg2: memref<128x2xbf16, #tpu.memory_space<vmem>>, %arg3: memref<1x2xf32, #tpu.memory_space<vmem>>, %arg4: memref<1x1xf32, #tpu.memory_space<smem>>) attributes {dimension_semantics = [], scalar_prefetch = 0 : i64, scratch_operands = 0 : i64, tpu.core_type = #tpu.core_type<tc>} {
    %c0 = arith.constant 0 : index
    %c0_0 = arith.constant 0 : index
    %0 = vector.load %arg0[%c0, %c0_0] : memref<64x128xf32, #tpu.memory_space<vmem>>, vector<64x128xf32>
    %1 = arith.truncf %0 : vector<64x128xf32> to vector<64x128xbf16>
    %c0_1 = arith.constant 0 : index
    %c0_2 = arith.constant 0 : index
    %2 = vector.load %arg1[%c0_1, %c0_2] : memref<64x128xf32, #tpu.memory_space<vmem>>, vector<64x128xf32>
    %3 = arith.truncf %2 : vector<64x128xf32> to vector<64x128xbf16>
    %c0_3 = arith.constant 0 : index
    %c0_4 = arith.constant 0 : index
    %4 = vector.load %arg2[%c0_3, %c0_4] : memref<128x2xbf16, #tpu.memory_space<vmem>>, vector<128x2xbf16>
    %c0_5 = arith.constant 0 : index
    %c0_6 = arith.constant 0 : index
    %5 = vector.load %arg3[%c0_5, %c0_6] : memref<1x2xf32, #tpu.memory_space<vmem>>, vector<1x2xf32>
    %cst = arith.constant dense<0.000000e+00> : vector<64x2xf32>
    %6 = tpu.matmul %1, %4, %cst {dimension_numbers = #tpu.dot_dimension_numbers<[1], [0], [0], [1], [0, 0, 1, 1], [], []>} : vector<64x128xbf16>, vector<128x2xbf16>, vector<64x2xf32> -> vector<64x2xf32>
    %7 = vector.broadcast %5 : vector<1x2xf32> to vector<64x2xf32>
    %8 = arith.addf %6, %7 : vector<64x2xf32>
    %cst_7 = arith.constant dense<0.000000e+00> : vector<64x2xf32>
    %9 = tpu.matmul %3, %4, %cst_7 {dimension_numbers = #tpu.dot_dimension_numbers<[1], [0], [0], [1], [0, 0, 1, 1], [], []>} : vector<64x128xbf16>, vector<128x2xbf16>, vector<64x2xf32> -> vector<64x2xf32>
    %10 = vector.broadcast %5 : vector<1x2xf32> to vector<64x2xf32>
    %11 = arith.addf %9, %10 : vector<64x2xf32>
    %cst_8 = arith.constant 0.000000e+00 : f32
    %12 = vector.broadcast %cst_8 : f32 to vector<64x2xf32>
    %13 = arith.subf %12, %8 : vector<64x2xf32>
    %cst_9 = arith.constant 0.000000e+00 : f32
    %14 = vector.broadcast %cst_9 : f32 to vector<64x2xf32>
    %15 = arith.maximumf %13, %14 : vector<64x2xf32>
    %16 = math.absf %8 : vector<64x2xf32>
    %cst_10 = arith.constant 0.000000e+00 : f32
    %17 = vector.broadcast %cst_10 : f32 to vector<64x2xf32>
    %18 = arith.subf %17, %16 : vector<64x2xf32>
    %19 = math.exp %18 : vector<64x2xf32>
    %20 = math.log1p %19 : vector<64x2xf32>
    %21 = arith.addf %15, %20 : vector<64x2xf32>
    %cst_11 = arith.constant 0.000000e+00 : f32
    %22 = vector.broadcast %cst_11 : f32 to vector<64x2xf32>
    %23 = arith.maximumf %11, %22 : vector<64x2xf32>
    %24 = math.absf %11 : vector<64x2xf32>
    %cst_12 = arith.constant 0.000000e+00 : f32
    %25 = vector.broadcast %cst_12 : f32 to vector<64x2xf32>
    %26 = arith.subf %25, %24 : vector<64x2xf32>
    %27 = math.exp %26 : vector<64x2xf32>
    %28 = math.log1p %27 : vector<64x2xf32>
    %29 = arith.addf %23, %28 : vector<64x2xf32>
    %30 = vector.shape_cast %21 : vector<64x2xf32> to vector<1x64x2xf32>
    %cst_13 = arith.constant dense<0.000000e+00> : vector<1xf32>
    %31 = vector.multi_reduction <add>, %30, %cst_13 [1, 2] : vector<1x64x2xf32> to vector<1xf32>
    %32 = vector.shape_cast %31 : vector<1xf32> to vector<1x1x1xf32>
    %33 = vector.extract %32[0, 0, 0] : f32 from vector<1x1x1xf32>
    %cst_14 = arith.constant 1.280000e+02 : f32
    %34 = arith.divf %33, %cst_14 : f32
    %35 = vector.shape_cast %29 : vector<64x2xf32> to vector<1x64x2xf32>
    %cst_15 = arith.constant dense<0.000000e+00> : vector<1xf32>
    %36 = vector.multi_reduction <add>, %35, %cst_15 [1, 2] : vector<1x64x2xf32> to vector<1xf32>
    %37 = vector.shape_cast %36 : vector<1xf32> to vector<1x1x1xf32>
    %38 = vector.extract %37[0, 0, 0] : f32 from vector<1x1x1xf32>
    %cst_16 = arith.constant 1.280000e+02 : f32
    %39 = arith.divf %38, %cst_16 : f32
    %40 = arith.addf %34, %39 : f32
    %cst_17 = arith.constant 5.000000e-01 : f32
    %41 = arith.mulf %cst_17, %40 : f32
    %c0_18 = arith.constant 0 : index
    %c0_19 = arith.constant 0 : index
    %42 = memref.load %arg4[%c0_18, %c0_19] : memref<1x1xf32, #tpu.memory_space<smem>>
    memref.store %41, %arg4[%c0_18, %c0_19] : memref<1x1xf32, #tpu.memory_space<smem>>
    return
  }
}

</mosaic_0001>

<llo_original>
// kernel: fcos_discriminator_loss.1
$region0: #{fcos_discriminator_loss.1}
  #allocation0 [shape = 'u32[]', space=smem, size = 0x4, offset = 0x4, fixed_abs, tag = 'smem constant byte address 0x4 - core index']
  #allocation1 [shape = 'u32[144,128]{1,0:T(1,128)}', space=vmem, size = 0x12000, scoped, tag = 'internal scratch']
  %s0 = inlined_call_operand.vmem [shape: f32[64,128], index: 0, kind: input, shape index: {}]
  %s1 = inlined_call_operand.hbm [shape: f32[64,128], index: 1, kind: input, shape index: {}]
  %s2 = inlined_call_operand.vmem [shape: bf16[128,2], index: 2, kind: input, shape index: {}]
  %s3 = inlined_call_operand.vmem [shape: f32[1,2], index: 3, kind: input, shape index: {}]
  %s4 = inlined_call_operand.hbm [shape: f32[1,1], index: 4, kind: output, shape index: {}]
  %s5 = sld [smem:[#allocation0]]
  $region30: #{fcos_discriminator_loss.1} parent=0
    _
  %s7 = ssub.s32 1, %s5
  %s8 = scalar_select 0, %s7, %s5
  $region1: #{fcos_discriminator_loss.1} parent=0
    #allocation2 [shape = 'u8[32768]{0}', space=vmem, size = 0x8000, scoped, tag = 'input window, operand 1, single buffered']
    #allocation3 [shape = 's32[1]{0}', space=sflag, size = 0x4, scoped, tag = 'scoped memory for fcos_discriminator_loss.1']
    #allocation4 [shape = 's32[1]{0}', space=sflag, size = 0x4, scoped, tag = 'scoped memory for fcos_discriminator_loss.1']
    #allocation5 [shape = 'u8[512]{0}', space=smem, size = 0x200, scoped, tag = 'output window, operand 0, single buffered']
    %9 = vsyncpa [#allocation3], 0
    %10 = vsyncpa [#allocation4], 0
    // Predicated region
    $region2: #{fcos_discriminator_loss.1} parent=1 // pred_check
      _
    $region3: #{fcos_discriminator_loss.1} parent=1 // pred_check_branch
      %12 = sbr.rel (0) target = $region5
    $region4: #{fcos_discriminator_loss.1} parent=1 // pred_region
      _
    $region5: #{fcos_discriminator_loss.1} parent=1 // pred_fallthru
      _
    // Predicated region
    $region6: #{fcos_discriminator_loss.1} parent=1 // pred_check
      _
    $region7: #{fcos_discriminator_loss.1} parent=1 // pred_check_branch
      %14 = sbr.rel (0) target = $region9
    $region8: #{fcos_discriminator_loss.1} parent=1 // pred_region
      %s16 = ssub.s32 1024, 1024
      %17 = vsyncadd [#allocation3], %s16
      %s18 = sshll.u32 [#allocation2], 4
      %s19 = int_to_ptr.vmem [resolvable:$true] %s18
      %24 = dma.hbm_to_vmem [thread:$0]  %s1, 1024, %s19, [#allocation3], 128, 128, 8
    $region9: #{fcos_discriminator_loss.1} parent=1 // pred_fallthru
      _
    // Predicated region
    $region10: #{fcos_discriminator_loss.1} parent=1 // pred_check
      _
    $region11: #{fcos_discriminator_loss.1} parent=1 // pred_check_branch
      %26 = sbr.rel (0) target = $region13
    $region12: #{fcos_discriminator_loss.1} parent=1 // pred_region
      _
    $region13: #{fcos_discriminator_loss.1} parent=1 // pred_fallthru
      _
    // Predicated region
    $region14: #{fcos_discriminator_loss.1} parent=1 // pred_check
      _
    $region15: #{fcos_discriminator_loss.1} parent=1 // pred_check_branch
      %28 = sbr.rel (0) target = $region17
    $region16: #{fcos_discriminator_loss.1} parent=1 // pred_region
      _
    $region17: #{fcos_discriminator_loss.1} parent=1 // pred_fallthru
      _
    // Predicated region
    $region18: #{fcos_discriminator_loss.1} parent=1 // pred_check
      _
    $region19: #{fcos_discriminator_loss.1} parent=1 // pred_check_branch
      %30 = sbr.rel (0) target = $region21
    $region20: #{fcos_discriminator_loss.1} parent=1 // pred_region
      %31 = dma.done [#allocation3], 1024
    $region21: #{fcos_discriminator_loss.1} parent=1 // pred_fallthru
      _
    %v33 = vld [vmem:[%s0] sm:$0xff]
    %v34 = vld [vmem:[%s0 + $0x8] sm:$0xff]
    %v35 = vld [vmem:[%s0 + $0x10] sm:$0xff]
    %v36 = vld [vmem:[%s0 + $0x18] sm:$0xff]
    %v37 = vld [vmem:[%s0 + $0x20] sm:$0xff]
    %v38 = vld [vmem:[%s0 + $0x28] sm:$0xff]
    %v39 = vld [vmem:[%s0 + $0x30] sm:$0xff]
    %v40 = vld [vmem:[%s0 + $0x38] sm:$0xff]
    %v41 = vpack.c.bf16 %v34, %v33
    %v42 = vpack.c.bf16 %v36, %v35
    %v43 = vpack.c.bf16 %v38, %v37
    %v44 = vpack.c.bf16 %v40, %v39
    %v45 = vld [vmem:[#allocation2] sm:$0xff]
    %v46 = vld [vmem:[#allocation2 + $0x8] sm:$0xff]
    %v47 = vld [vmem:[#allocation2 + $0x10] sm:$0xff]
    %v48 = vld [vmem:[#allocation2 + $0x18] sm:$0xff]
    %v49 = vld [vmem:[#allocation2 + $0x20] sm:$0xff]
    %v50 = vld [vmem:[#allocation2 + $0x28] sm:$0xff]
    %v51 = vld [vmem:[#allocation2 + $0x30] sm:$0xff]
    %v52 = vld [vmem:[#allocation2 + $0x38] sm:$0xff]
    %v53 = vpack.c.bf16 %v46, %v45
    %v54 = vpack.c.bf16 %v48, %v47
    %v55 = vpack.c.bf16 %v50, %v49
    %v56 = vpack.c.bf16 %v52, %v51
    %v57 = vld [vmem:[%s2] sm:$0xf]
    %v58 = vld [vmem:[%s2 + $0x4] sm:$0xf]
    %v59 = vld [vmem:[%s2 + $0x8] sm:$0xf]
    %v60 = vld [vmem:[%s2 + $0xc] sm:$0xf]
    %v61 = vld [vmem:[%s2 + $0x10] sm:$0xf]
    %v62 = vld [vmem:[%s2 + $0x14] sm:$0xf]
    %v63 = vld [vmem:[%s2 + $0x18] sm:$0xf]
    %v64 = vld [vmem:[%s2 + $0x1c] sm:$0xf]
    %v65 = vld [vmem:[%s2 + $0x20] sm:$0xf]
    %v66 = vld [vmem:[%s2 + $0x24] sm:$0xf]
    %v67 = vld [vmem:[%s2 + $0x28] sm:$0xf]
    %v68 = vld [vmem:[%s2 + $0x2c] sm:$0xf]
    %v69 = vld [vmem:[%s2 + $0x30] sm:$0xf]
    %v70 = vld [vmem:[%s2 + $0x34] sm:$0xf]
    %v71 = vld [vmem:[%s2 + $0x38] sm:$0xf]
    %v72 = vld [vmem:[%s2 + $0x3c] sm:$0xf]
    %v73 = vld [vmem:[%s3] sm:$0x1]
    %v75 = vlaneseq
    %v76 = vshrl.u32 %v75, 7
    %v77 = vsub.s32 0, %v76
    %v78 = vrot.slane %v73, %v77
    %v96 = vunpack.c.l.b16 %v57
    %v97 = vunpack.c.l.b16 %v58
    %v98 = vunpack.c.l.b16 %v59
    %v99 = vunpack.c.l.b16 %v60
    %v100 = vunpack.c.l.b16 %v61
    %v101 = vunpack.c.l.b16 %v62
    %v102 = vunpack.c.l.b16 %v63
    %v103 = vunpack.c.l.b16 %v64
    %v104 = vunpack.c.l.b16 %v65
    %v105 = vunpack.c.l.b16 %v66
    %v106 = vunpack.c.l.b16 %v67
    %v107 = vunpack.c.l.b16 %v68
    %v108 = vunpack.c.l.b16 %v69
    %v109 = vunpack.c.l.b16 %v70
    %v110 = vunpack.c.l.b16 %v71
    %v111 = vunpack.c.l.b16 %v72
    %v112 = vpack.c.b16 %v97, %v96
    %v113 = vpack.c.b16 %v99, %v98
    %v114 = vpack.c.b16 %v101, %v100
    %v115 = vpack.c.b16 %v103, %v102
    %v116 = vpack.c.b16 %v105, %v104
    %v117 = vpack.c.b16 %v107, %v106
    %v118 = vpack.c.b16 %v109, %v108
    %v119 = vpack.c.b16 %v111, %v110
    %128 = vmatprep.subr.bf16.mxu0 0
    %129 = vmatpush1.bf16.msra.mxu0 %v112
    %130 = vmatprep.subr.bf16.mxu0 0
    %131 = vmatpush1.bf16.msra.mxu0 %v113
    %132 = vmatprep.subr.bf16.mxu0 0
    %133 = vmatpush1.bf16.msra.mxu0 %v114
    %134 = vmatprep.subr.bf16.mxu0 0
    %135 = vmatpush1.bf16.msra.mxu0 %v115
    %136 = vmatprep.subr.bf16.mxu0 0
    %137 = vmatpush1.bf16.msra.mxu0 %v116
    %138 = vmatprep.subr.bf16.mxu0 0
    %139 = vmatpush1.bf16.msra.mxu0 %v117
    %140 = vmatprep.subr.bf16.mxu0 0
    %141 = vmatpush1.bf16.msra.mxu0 %v118
    %142 = vmatprep.subr.bf16.mxu0 0
    %143 = vmatpush1.bf16.msra.mxu0 %v119
    %144 = vmatprep.subr.bf16.mxu0 0
    %145 = vmatpush1.bf16.msra.mxu0 0
    %146 = vmatprep.subr.bf16.mxu0 0
    %147 = vmatpush1.bf16.msra.mxu0 0
    %148 = vmatprep.subr.bf16.mxu0 0
    %149 = vmatpush1.bf16.msra.mxu0 0
    %150 = vmatprep.subr.bf16.mxu0 0
    %151 = vmatpush1.bf16.msra.mxu0 0
    %152 = vmatprep.subr.bf16.mxu0 0
    %153 = vmatpush1.bf16.msra.mxu0 0
    %154 = vmatprep.subr.bf16.mxu0 0
    %155 = vmatpush1.bf16.msra.mxu0 0
    %156 = vmatprep.subr.bf16.mxu0 0
    %157 = vmatpush1.bf16.msra.mxu0 0
    %158 = vmatprep.subr.bf16.mxu0 0
    %159 = vmatpush1.bf16.msra.mxu0 0
    %160 = vmatprep.mubr.bf16.mxu0 0
    %161 = vmatmul.mubr.bf16.gmra.mrb[0].mxu0 %v41
    %v162 = vpop.f32.mrb[0].mxu0
    %v163 = vadd.f32 %v78, %v162
    %v164 = vpop.f32.mrb[0].mxu0
    %v165 = vpop.f32.mrb[0].mxu0
    %v166 = vadd.f32 %v78, %v165
    %v167 = vpop.f32.mrb[0].mxu0
    %168 = vmatprep.mubr.bf16.mxu0 0
    %169 = vmatmul.mubr.bf16.gmra.mrb[0].mxu0 %v42
    %v170 = vpop.f32.mrb[0].mxu0
    %v171 = vadd.f32 %v78, %v170
    %v172 = vpop.f32.mrb[0].mxu0
    %v173 = vpop.f32.mrb[0].mxu0
    %v174 = vadd.f32 %v78, %v173
    %v175 = vpop.f32.mrb[0].mxu0
    %176 = vmatprep.mubr.bf16.mxu0 0
    %177 = vmatmul.mubr.bf16.gmra.mrb[0].mxu0 %v43
    %v178 = vpop.f32.mrb[0].mxu0
    %v179 = vadd.f32 %v78, %v178
    %v180 = vpop.f32.mrb[0].mxu0
    %v181 = vpop.f32.mrb[0].mxu0
    %v182 = vadd.f32 %v78, %v181
    %v183 = vpop.f32.mrb[0].mxu0
    %184 = vmatprep.mubr.bf16.mxu0 0
    %185 = vmatmul.mubr.bf16.gmra.mrb[0].mxu0 %v44
    %v186 = vpop.f32.mrb[0].mxu0
    %v187 = vadd.f32 %v78, %v186
    %v188 = vpop.f32.mrb[0].mxu0
    %v189 = vpop.f32.mrb[0].mxu0
    %v190 = vadd.f32 %v78, %v189
    %v191 = vpop.f32.mrb[0].mxu0
    %192 = vdwg.mxu0
    %193 = vmatprep.subr.bf16.mxu0 0
    %194 = vmatpush1.bf16.msra.mxu0 %v112
    %195 = vmatprep.subr.bf16.mxu0 0
    %196 = vmatpush1.bf16.msra.mxu0 %v113
    %197 = vmatprep.subr.bf16.mxu0 0
    %198 = vmatpush1.bf16.msra.mxu0 %v114
    %199 = vmatprep.subr.bf16.mxu0 0
    %200 = vmatpush1.bf16.msra.mxu0 %v115
    %201 = vmatprep.subr.bf16.mxu0 0
    %202 = vmatpush1.bf16.msra.mxu0 %v116
    %203 = vmatprep.subr.bf16.mxu0 0
    %204 = vmatpush1.bf16.msra.mxu0 %v117
    %205 = vmatprep.subr.bf16.mxu0 0
    %206 = vmatpush1.bf16.msra.mxu0 %v118
    %207 = vmatprep.subr.bf16.mxu0 0
    %208 = vmatpush1.bf16.msra.mxu0 %v119
    %209 = vmatprep.subr.bf16.mxu0 0
    %210 = vmatpush1.bf16.msra.mxu0 0
    %211 = vmatprep.subr.bf16.mxu0 0
    %212 = vmatpush1.bf16.msra.mxu0 0
    %213 = vmatprep.subr.bf16.mxu0 0
    %214 = vmatpush1.bf16.msra.mxu0 0
    %215 = vmatprep.subr.bf16.mxu0 0
    %216 = vmatpush1.bf16.msra.mxu0 0
    %217 = vmatprep.subr.bf16.mxu0 0
    %218 = vmatpush1.bf16.msra.mxu0 0
    %219 = vmatprep.subr.bf16.mxu0 0
    %220 = vmatpush1.bf16.msra.mxu0 0
    %221 = vmatprep.subr.bf16.mxu0 0
    %222 = vmatpush1.bf16.msra.mxu0 0
    %223 = vmatprep.subr.bf16.mxu0 0
    %224 = vmatpush1.bf16.msra.mxu0 0
    %225 = vmatprep.mubr.bf16.mxu0 0
    %226 = vmatmul.mubr.bf16.gmra.mrb[0].mxu0 %v53
    %v227 = vpop.f32.mrb[0].mxu0
    %v228 = vadd.f32 %v78, %v227
    %v229 = vpop.f32.mrb[0].mxu0
    %v230 = vpop.f32.mrb[0].mxu0
    %v231 = vadd.f32 %v78, %v230
    %v232 = vpop.f32.mrb[0].mxu0
    %233 = vmatprep.mubr.bf16.mxu0 0
    %234 = vmatmul.mubr.bf16.gmra.mrb[0].mxu0 %v54
    %v235 = vpop.f32.mrb[0].mxu0
    %v236 = vadd.f32 %v78, %v235
    %v237 = vpop.f32.mrb[0].mxu0
    %v238 = vpop.f32.mrb[0].mxu0
    %v239 = vadd.f32 %v78, %v238
    %v240 = vpop.f32.mrb[0].mxu0
    %241 = vmatprep.mubr.bf16.mxu0 0
    %242 = vmatmul.mubr.bf16.gmra.mrb[0].mxu0 %v55
    %v243 = vpop.f32.mrb[0].mxu0
    %v244 = vadd.f32 %v78, %v243
    %v245 = vpop.f32.mrb[0].mxu0
    %v246 = vpop.f32.mrb[0].mxu0
    %v247 = vadd.f32 %v78, %v246
    %v248 = vpop.f32.mrb[0].mxu0
    %249 = vmatprep.mubr.bf16.mxu0 0
    %250 = vmatmul.mubr.bf16.gmra.mrb[0].mxu0 %v56
    %v251 = vpop.f32.mrb[0].mxu0
    %v252 = vadd.f32 %v78, %v251
    %v253 = vpop.f32.mrb[0].mxu0
    %v254 = vpop.f32.mrb[0].mxu0
    %v255 = vadd.f32 %v78, %v254
    %v256 = vpop.f32.mrb[0].mxu0
    %257 = vdwg.mxu0
    %v258 = vsub.f32 0.0, %v163
    %v259 = vsub.f32 0.0, %v166
    %v260 = vsub.f32 0.0, %v171
    %v261 = vsub.f32 0.0, %v174
    %v262 = vsub.f32 0.0, %v179
    %v263 = vsub.f32 0.0, %v182
    %v264 = vsub.f32 0.0, %v187
    %v265 = vsub.f32 0.0, %v190
    %v266 = vmax.f32 %v258, 0.0
    %v267 = vmax.f32 %v259, 0.0
    %v268 = vmax.f32 %v260, 0.0
    %v269 = vmax.f32 %v261, 0.0
    %v270 = vmax.f32 %v262, 0.0
    %v271 = vmax.f32 %v263, 0.0
    %v272 = vmax.f32 %v264, 0.0
    %v273 = vmax.f32 %v265, 0.0
    %v274 = vand.u32 2147483647, %v163
    %v275 = vand.u32 2147483647, %v166
    %v276 = vand.u32 2147483647, %v171
    %v277 = vand.u32 2147483647, %v174
    %v278 = vand.u32 2147483647, %v179
    %v279 = vand.u32 2147483647, %v182
    %v280 = vand.u32 2147483647, %v187
    %v281 = vand.u32 2147483647, %v190
    %v282 = vsub.f32 0.0, %v274
    %v283 = vsub.f32 0.0, %v275
    %v284 = vsub.f32 0.0, %v276
    %v285 = vsub.f32 0.0, %v277
    %v286 = vsub.f32 0.0, %v278
    %v287 = vsub.f32 0.0, %v279
    %v288 = vsub.f32 0.0, %v280
    %v289 = vsub.f32 0.0, %v281
    %v290 = vmul.f32 %v282, 1.442695
    %v291 = vpow.pop %v290
    %v292 = vmul.f32 %v283, 1.442695
    %v293 = vpow.pop %v292
    %v294 = vmul.f32 %v284, 1.442695
    %v295 = vpow.pop %v294
    %v296 = vmul.f32 %v285, 1.442695
    %v297 = vpow.pop %v296
    %v298 = vmul.f32 %v286, 1.442695
    %v299 = vpow.pop %v298
    %v300 = vmul.f32 %v287, 1.442695
    %v301 = vpow.pop %v300
    %v302 = vmul.f32 %v288, 1.442695
    %v303 = vpow.pop %v302
    %v304 = vmul.f32 %v289, 1.442695
    %v305 = vpow.pop %v304
    %v306 = vadd.f32 %v291, 1.0
    %v307 = vlog2.pop %v306
    %v308 = vmul.f32 %v307, 0.6931472
    %v309 = vmul.f32 -0.5, %v291
    %v310 = vadd.f32 %v309, 1.0
    %v311 = vmul.f32 %v310, %v291
    %v312 = vand.u32 2147483647, %v291
    %vm313 = vcmp.lt.f32.partialorder %v312, 0.0004427343
    %v314 = vsel %vm313, %v311, %v308
    %v315 = vadd.f32 %v293, 1.0
    %v316 = vlog2.pop %v315
    %v317 = vmul.f32 %v316, 0.6931472
    %v318 = vmul.f32 -0.5, %v293
    %v319 = vadd.f32 %v318, 1.0
    %v320 = vmul.f32 %v319, %v293
    %v321 = vand.u32 2147483647, %v293
    %vm322 = vcmp.lt.f32.partialorder %v321, 0.0004427343
    %v323 = vsel %vm322, %v320, %v317
    %v324 = vadd.f32 %v295, 1.0
    %v325 = vlog2.pop %v324
    %v326 = vmul.f32 %v325, 0.6931472
    %v327 = vmul.f32 -0.5, %v295
    %v328 = vadd.f32 %v327, 1.0
    %v329 = vmul.f32 %v328, %v295
    %v330 = vand.u32 2147483647, %v295
    %vm331 = vcmp.lt.f32.partialorder %v330, 0.0004427343
    %v332 = vsel %vm331, %v329, %v326
    %v333 = vadd.f32 %v297, 1.0
    %v334 = vlog2.pop %v333
    %v335 = vmul.f32 %v334, 0.6931472
    %v336 = vmul.f32 -0.5, %v297
    %v337 = vadd.f32 %v336, 1.0
    %v338 = vmul.f32 %v337, %v297
    %v339 = vand.u32 2147483647, %v297
    %vm340 = vcmp.lt.f32.partialorder %v339, 0.0004427343
    %v341 = vsel %vm340, %v338, %v335
    %v342 = vadd.f32 %v299, 1.0
    %v343 = vlog2.pop %v342
    %v344 = vmul.f32 %v343, 0.6931472
    %v345 = vmul.f32 -0.5, %v299
    %v346 = vadd.f32 %v345, 1.0
    %v347 = vmul.f32 %v346, %v299
    %v348 = vand.u32 2147483647, %v299
    %vm349 = vcmp.lt.f32.partialorder %v348, 0.0004427343
    %v350 = vsel %vm349, %v347, %v344
    %v351 = vadd.f32 %v301, 1.0
    %v352 = vlog2.pop %v351
    %v353 = vmul.f32 %v352, 0.6931472
    %v354 = vmul.f32 -0.5, %v301
    %v355 = vadd.f32 %v354, 1.0
    %v356 = vmul.f32 %v355, %v301
    %v357 = vand.u32 2147483647, %v301
    %vm358 = vcmp.lt.f32.partialorder %v357, 0.0004427343
    %v359 = vsel %vm358, %v356, %v353
    %v360 = vadd.f32 %v303, 1.0
    %v361 = vlog2.pop %v360
    %v362 = vmul.f32 %v361, 0.6931472
    %v363 = vmul.f32 -0.5, %v303
    %v364 = vadd.f32 %v363, 1.0
    %v365 = vmul.f32 %v364, %v303
    %v366 = vand.u32 2147483647, %v303
    %vm367 = vcmp.lt.f32.partialorder %v366, 0.0004427343
    %v368 = vsel %vm367, %v365, %v362
    %v369 = vadd.f32 %v305, 1.0
    %v370 = vlog2.pop %v369
    %v371 = vmul.f32 %v370, 0.6931472
    %v372 = vmul.f32 -0.5, %v305
    %v373 = vadd.f32 %v372, 1.0
    %v374 = vmul.f32 %v373, %v305
    %v375 = vand.u32 2147483647, %v305
    %vm376 = vcmp.lt.f32.partialorder %v375, 0.0004427343
    %v377 = vsel %vm376, %v374, %v371
    %v378 = vadd.f32 %v266, %v314
    %v379 = vadd.f32 %v267, %v323
    %v380 = vadd.f32 %v268, %v332
    %v381 = vadd.f32 %v269, %v341
    %v382 = vadd.f32 %v270, %v350
    %v383 = vadd.f32 %v271, %v359
    %v384 = vadd.f32 %v272, %v368
    %v385 = vadd.f32 %v273, %v377
    %v386 = vmax.f32 %v228, 0.0
    %v387 = vmax.f32 %v231, 0.0
    %v388 = vmax.f32 %v236, 0.0
    %v389 = vmax.f32 %v239, 0.0
    %v390 = vmax.f32 %v244, 0.0
    %v391 = vmax.f32 %v247, 0.0
    %v392 = vmax.f32 %v252, 0.0
    %v393 = vmax.f32 %v255, 0.0
    %v394 = vand.u32 2147483647, %v228
    %v395 = vand.u32 2147483647, %v231
    %v396 = vand.u32 2147483647, %v236
    %v397 = vand.u32 2147483647, %v239
    %v398 = vand.u32 2147483647, %v244
    %v399 = vand.u32 2147483647, %v247
    %v400 = vand.u32 2147483647, %v252
    %v401 = vand.u32 2147483647, %v255
    %v402 = vsub.f32 0.0, %v394
    %v403 = vsub.f32 0.0, %v395
    %v404 = vsub.f32 0.0, %v396
    %v405 = vsub.f32 0.0, %v397
    %v406 = vsub.f32 0.0, %v398
    %v407 = vsub.f32 0.0, %v399
    %v408 = vsub.f32 0.0, %v400
    %v409 = vsub.f32 0.0, %v401
    %v410 = vmul.f32 %v402, 1.442695
    %v411 = vpow.pop %v410
    %v412 = vmul.f32 %v403, 1.442695
    %v413 = vpow.pop %v412
    %v414 = vmul.f32 %v404, 1.442695
    %v415 = vpow.pop %v414
    %v416 = vmul.f32 %v405, 1.442695
    %v417 = vpow.pop %v416
    %v418 = vmul.f32 %v406, 1.442695
    %v419 = vpow.pop %v418
    %v420 = vmul.f32 %v407, 1.442695
    %v421 = vpow.pop %v420
    %v422 = vmul.f32 %v408, 1.442695
    %v423 = vpow.pop %v422
    %v424 = vmul.f32 %v409, 1.442695
    %v425 = vpow.pop %v424
    %v426 = vadd.f32 %v411, 1.0
    %v427 = vlog2.pop %v426
    %v428 = vmul.f32 %v427, 0.6931472
    %v429 = vmul.f32 -0.5, %v411
    %v430 = vadd.f32 %v429, 1.0
    %v431 = vmul.f32 %v430, %v411
    %v432 = vand.u32 2147483647, %v411
    %vm433 = vcmp.lt.f32.partialorder %v432, 0.0004427343
    %v434 = vsel %vm433, %v431, %v428
    %v435 = vadd.f32 %v413, 1.0
    %v436 = vlog2.pop %v435
    %v437 = vmul.f32 %v436, 0.6931472
    %v438 = vmul.f32 -0.5, %v413
    %v439 = vadd.f32 %v438, 1.0
    %v440 = vmul.f32 %v439, %v413
    %v441 = vand.u32 2147483647, %v413
    %vm442 = vcmp.lt.f32.partialorder %v441, 0.0004427343
    %v443 = vsel %vm442, %v440, %v437
    %v444 = vadd.f32 %v415, 1.0
    %v445 = vlog2.pop %v444
    %v446 = vmul.f32 %v445, 0.6931472
    %v447 = vmul.f32 -0.5, %v415
    %v448 = vadd.f32 %v447, 1.0
    %v449 = vmul.f32 %v448, %v415
    %v450 = vand.u32 2147483647, %v415
    %vm451 = vcmp.lt.f32.partialorder %v450, 0.0004427343
    %v452 = vsel %vm451, %v449, %v446
    %v453 = vadd.f32 %v417, 1.0
    %v454 = vlog2.pop %v453
    %v455 = vmul.f32 %v454, 0.6931472
    %v456 = vmul.f32 -0.5, %v417
    %v457 = vadd.f32 %v456, 1.0
    %v458 = vmul.f32 %v457, %v417
    %v459 = vand.u32 2147483647, %v417
    %vm460 = vcmp.lt.f32.partialorder %v459, 0.0004427343
    %v461 = vsel %vm460, %v458, %v455
    %v462 = vadd.f32 %v419, 1.0
    %v463 = vlog2.pop %v462
    %v464 = vmul.f32 %v463, 0.6931472
    %v465 = vmul.f32 -0.5, %v419
    %v466 = vadd.f32 %v465, 1.0
    %v467 = vmul.f32 %v466, %v419
    %v468 = vand.u32 2147483647, %v419
    %vm469 = vcmp.lt.f32.partialorder %v468, 0.0004427343
    %v470 = vsel %vm469, %v467, %v464
    %v471 = vadd.f32 %v421, 1.0
    %v472 = vlog2.pop %v471
    %v473 = vmul.f32 %v472, 0.6931472
    %v474 = vmul.f32 -0.5, %v421
    %v475 = vadd.f32 %v474, 1.0
    %v476 = vmul.f32 %v475, %v421
    %v477 = vand.u32 2147483647, %v421
    %vm478 = vcmp.lt.f32.partialorder %v477, 0.0004427343
    %v479 = vsel %vm478, %v476, %v473
    %v480 = vadd.f32 %v423, 1.0
    %v481 = vlog2.pop %v480
    %v482 = vmul.f32 %v481, 0.6931472
    %v483 = vmul.f32 -0.5, %v423
    %v484 = vadd.f32 %v483, 1.0
    %v485 = vmul.f32 %v484, %v423
    %v486 = vand.u32 2147483647, %v423
    %vm487 = vcmp.lt.f32.partialorder %v486, 0.0004427343
    %v488 = vsel %vm487, %v485, %v482
    %v489 = vadd.f32 %v425, 1.0
    %v490 = vlog2.pop %v489
    %v491 = vmul.f32 %v490, 0.6931472
    %v492 = vmul.f32 -0.5, %v425
    %v493 = vadd.f32 %v492, 1.0
    %v494 = vmul.f32 %v493, %v425
    %v495 = vand.u32 2147483647, %v425
    %vm496 = vcmp.lt.f32.partialorder %v495, 0.0004427343
    %v497 = vsel %vm496, %v494, %v491
    %v498 = vadd.f32 %v386, %v434
    %v499 = vadd.f32 %v387, %v443
    %v500 = vadd.f32 %v388, %v452
    %v501 = vadd.f32 %v389, %v461
    %v502 = vadd.f32 %v390, %v470
    %v503 = vadd.f32 %v391, %v479
    %v504 = vadd.f32 %v392, %v488
    %v505 = vadd.f32 %v393, %v497
    %vm506 = vcmask 15360
    %v507 = vsel %vm506, %v378, 0.0
    %v508 = vsel %vm506, %v379, 0.0
    %v509 = vadd.f32 %v507, %v508
    %v510 = vsel %vm506, %v380, 0.0
    %v511 = vadd.f32 %v509, %v510
    %v512 = vsel %vm506, %v381, 0.0
    %v513 = vadd.f32 %v511, %v512
    %v514 = vsel %vm506, %v382, 0.0
    %v515 = vadd.f32 %v513, %v514
    %v516 = vsel %vm506, %v383, 0.0
    %v517 = vadd.f32 %v515, %v516
    %v518 = vsel %vm506, %v384, 0.0
    %v519 = vadd.f32 %v517, %v518
    %v520 = vsel %vm506, %v385, 0.0
    %v521 = vadd.f32 %v519, %v520
    %522 = vadd.xlane.f32.xlu0 %v521
    %v523 = vpop.xlane.xlu0 %522
    %v524 = vrot.slane %v523, 4
    %v525 = vadd.f32 %v523, %v524
    %v526 = vrot.slane %v525, 2
    %v527 = vadd.f32 %v525, %v526
    %v528 = vrot.slane %v527, 1
    %v529 = vadd.f32 %v527, %v528
    %s530 = vtos %v529
    %v531 = vrcp.pop 128.0
    %s532 = vtos %v531
    %s533 = smul.f32 %s530, %s532
    %v534 = vsel %vm506, %v498, 0.0
    %v535 = vsel %vm506, %v499, 0.0
    %v536 = vadd.f32 %v534, %v535
    %v537 = vsel %vm506, %v500, 0.0
    %v538 = vadd.f32 %v536, %v537
    %v539 = vsel %vm506, %v501, 0.0
    %v540 = vadd.f32 %v538, %v539
    %v541 = vsel %vm506, %v502, 0.0
    %v542 = vadd.f32 %v540, %v541
    %v543 = vsel %vm506, %v503, 0.0
    %v544 = vadd.f32 %v542, %v543
    %v545 = vsel %vm506, %v504, 0.0
    %v546 = vadd.f32 %v544, %v545
    %v547 = vsel %vm506, %v505, 0.0
    %v548 = vadd.f32 %v546, %v547
    %549 = vadd.xlane.f32.xlu0 %v548
    %v550 = vpop.xlane.xlu0 %549
    %v551 = vrot.slane %v550, 4
    %v552 = vadd.f32 %v550, %v551
    %v553 = vrot.slane %v552, 2
    %v554 = vadd.f32 %v552, %v553
    %v555 = vrot.slane %v554, 1
    %v556 = vadd.f32 %v554, %v555
    %s557 = vtos %v556
    %v558 = vrcp.pop 128.0
    %s559 = vtos %v558
    %s560 = smul.f32 %s557, %s559
    %s561 = sadd.f32 %s533, %s560
    %s562 = smul.f32 %s561, 0.5
    %s563 = scalar_lea.smem [#allocation5], 0
    %564 = sst [smem:[%s563]] %s562
    // Predicated region
    $region22: #{fcos_discriminator_loss.1} parent=1 // pred_check
      _
    $region23: #{fcos_discriminator_loss.1} parent=1 // pred_check_branch
      %566 = sbr.rel (0) target = $region25
    $region24: #{fcos_discriminator_loss.1} parent=1 // pred_region
      %s568 = ssub.s32 16, 16
      %569 = vsyncadd [#allocation4], %s568
      %572 = dma.smem_to_hbm [#allocation5], 16, %s4, [#allocation4]
    $region25: #{fcos_discriminator_loss.1} parent=1 // pred_fallthru
      _
    // Predicated region
    $region26: #{fcos_discriminator_loss.1} parent=1 // pred_check
      _
    $region27: #{fcos_discriminator_loss.1} parent=1 // pred_check_branch
      %574 = sbr.rel (0) target = $region29
    $region28: #{fcos_discriminator_loss.1} parent=1 // pred_region
      %575 = dma.done [#allocation4], 16
    $region29: #{fcos_discriminator_loss.1} parent=1 // pred_fallthru
      _
    %576 = sfence
    %577 = vsyncpa [#allocation3], 1
    %578 = vsyncpa [#allocation4], 1

</llo_original>
